<compile_context>
chip_gen: v7x
topology: tpu7x:2x2x1
jax: 0.10.0
libtpu: 0.0.40
codegen_flags: <defaults>
</compile_context>

<pallas_src>
import functools

import numpy as np
import jax
import jax.numpy as jnp
from jax import lax
from jax.experimental import pallas as pl
from jax.experimental.pallas import tpu as pltpu


def _l2pool_kernel(x_ref, o_ref, rows_ref, ol_ref, *, taps, eps):
    # x_ref   : (nb, He, We, Cb)   input block, channels-last, He/We even
    # o_ref   : (nb, Ho, Wo, Cb)   output block, Ho = He//2, Wo = We//2
    # rows_ref: (Ho, We, Cb) f32   vertical (H-tap) partial sums of x**2
    # ol_ref  : (Ho, Wo, Cb) f32   left-shifted odd-column plane (col 0 == pad)
    nb, he, we, cb = x_ref.shape
    ho = he // 2
    wo = we // 2
    t0, t1, t2 = taps            # separable taps (0.25, 0.5, 0.25)

    # Column 0 of the shifted odd plane is the zero conv-padding column; it is
    # the only part of ol_ref never overwritten below, so zero just that.
    ol_ref[:, pl.ds(0, 1), :] = jnp.zeros((ho, 1, cb), jnp.float32)

    for b in range(nb):                               # static unroll, nb small
        x = x_ref[b].astype(jnp.float32)              # (He, We, Cb)
        xr = x.reshape(ho, 2, we, cb)                 # free leading-dim parity split
        xe = xr[:, 0]                                 # even input rows 0,2,4,...
        xo = xr[:, 1]                                 # odd  input rows 1,3,5,...
        x2o = xo * xo

        # ---- vertical (H) pass: separable taps, leading-dim slices only ----
        # output row oh uses input rows 2oh-1 (odd), 2oh (even), 2oh+1 (odd);
        # row -1 is conv padding (zero) and simply gets no contribution.
        rows_ref[...] = t1 * (xe * xe) + t2 * x2o
        if ho > 1:
            rows_ref[pl.ds(1, ho - 1), :, :] += t0 * x2o[: ho - 1]

        # ---- horizontal (W) pass: one even/odd de-interleave (2 strided reads)
        ev = rows_ref[:, pl.ds(0, wo, stride=2), :]   # cols 0,2,... -> centre tap
        od = rows_ref[:, pl.ds(1, wo, stride=2), :]   # cols 1,3,... -> right tap
        # left tap needs odd column ow-1 (zero for ow==0): small shifted store
        # into ol_ref, then one aligned read back.
        if wo > 1:
            ol_ref[:, pl.ds(1, wo - 1), :] = od[:, : wo - 1, :]
        od_left = ol_ref[...]

        acc = t1 * ev + t2 * od + t0 * od_left
        o_ref[b] = jnp.sqrt(acc + eps).astype(o_ref.dtype)


def _separable_taps(filter_size):
    a = np.hanning(filter_size)[1:-1]
    return tuple(float(v) for v in (a / a.sum()))     # outer(t,t) == normalized g


def _vmem_capacity_bytes():
    try:
        info = pltpu.get_tpu_info()
        for attr in ("vmem_capacity_bytes", "vmem_bytes", "vmem_size_bytes"):
            v = getattr(info, attr, None)
            if v:
                return int(v)
    except Exception:
        pass
    return 64 * 1024 * 1024          # conservative default (v7x physical VMEM)


def l2pooling(x, *, filter_size=5, stride=2):
    """Pallas TPU equivalent of L2pooling.forward (NCHW in, NCHW out)."""
    if filter_size != 5 or stride != 2:
        raise NotImplementedError("kernel specialised for filter_size=5, stride=2")
    n, c, h, w = x.shape
    taps = _separable_taps(filter_size)               # (0.25, 0.5, 0.25)
    pad = (filter_size - 2) // 2                      # = 1
    k = filter_size - 2                               # 3 taps
    h_out = (h + 2 * pad - k) // stride + 1
    w_out = (w + 2 * pad - k) // stride + 1

    # Channels-last so C maps to the lane axis (dense vregs / dense stores).
    xt = jnp.transpose(x, (0, 2, 3, 1))               # (N, H, W, C)

    # Pad H / W to even with zero rows/cols at the bottom/right: x**2 of the
    # pad is 0, exactly where the conv padding would be, so outputs are equal.
    he, we = h + (h % 2), w + (w % 2)
    # Pad C to a multiple of 128 only when C is large (lane-dense blocks).
    c_pad = c if c <= 128 else -(-c // 128) * 128
    if (he, we, c_pad) != (h, w, c):
        xt = jnp.pad(xt, ((0, 0), (0, he - h), (0, we - w), (0, c_pad - c)))
    assert h_out == he // 2 and w_out == we // 2

    itemsize = jnp.dtype(x.dtype).itemsize
    vmem_cap = _vmem_capacity_bytes()
    # v5e / v6e: 128 MiB physical -> raise the scoped limit; v7x: stay modest.
    vmem_limit = 96 * 1024 * 1024 if vmem_cap >= 100 * 1024 * 1024 else 32 * 1024 * 1024
    budget = vmem_limit // 2          # headroom for double-buffering + temporaries

    def ws_bytes(nb_, cb_):
        # double-buffered in/out blocks + scratches + f32 value temporaries
        return cb_ * (2 * nb_ * he * we * itemsize
                      + 2 * nb_ * h_out * w_out * itemsize
                      + (h_out * we + h_out * w_out) * 4
                      + nb_ * (he * we + h_out * we + 4 * h_out * w_out) * 4)

    if c_pad <= 128:
        c_blk = c_pad
    else:
        cands = [cb_ for cb_ in range(128, c_pad + 1, 128)
                 if c_pad % cb_ == 0 and ws_bytes(1, cb_) <= budget]
        c_blk = max(cands) if cands else 128
    n_cb = c_pad // c_blk

    # Widen the batch block when per-step blocks are tiny, but keep >= 2 grid
    # steps so both v7x TensorCores get work.
    nb = 1
    while (nb * 2 <= min(n, 8) and n % (nb * 2) == 0
           and (n // (nb * 2)) * n_cb >= 2
           and nb * he * we * c_blk * itemsize < (1 << 20)
           and ws_bytes(nb * 2, c_blk) <= budget):
        nb *= 2
    # If everything landed in a single grid step, split channels for megacore.
    if (n // nb) * n_cb < 2 and c_blk % 256 == 0:
        c_blk //= 2
        n_cb = c_pad // c_blk

    kernel = functools.partial(_l2pool_kernel, taps=taps, eps=1e-12)

    out_t = pl.pallas_call(
        kernel,
        out_shape=jax.ShapeDtypeStruct((n, h_out, w_out, c_pad), x.dtype),
        grid=(n // nb, n_cb),
        in_specs=[pl.BlockSpec((nb, he, we, c_blk), lambda ni, ci: (ni, 0, 0, ci))],
        out_specs=pl.BlockSpec((nb, h_out, w_out, c_blk), lambda ni, ci: (ni, 0, 0, ci)),
        scratch_shapes=[pltpu.VMEM((h_out, we, c_blk), jnp.float32),
                        pltpu.VMEM((h_out, w_out, c_blk), jnp.float32)],
        compiler_params=pltpu.CompilerParams(
            dimension_semantics=("parallel", "parallel"),
            vmem_limit_bytes=vmem_limit),
    )(xt)

    if c_pad != c:
        out_t = out_t[..., :c]
    return jnp.transpose(out_t, (0, 3, 1, 2))         # back to NCHW


def _reference(x, filter_size=5, stride=2):
    """Pure-JAX reference of the PyTorch forward (grouped conv)."""
    a = np.hanning(filter_size)[1:-1]
    g = (a[:, None] * a[None, :])
    g = (g / g.sum()).astype(np.float32)
    c = x.shape[1]
    filt = jnp.asarray(np.tile(g[None, None], (c, 1, 1, 1)))   # (C, 1, 3, 3)
    pad = (filter_size - 2) // 2
    out = lax.conv_general_dilated(
        x.astype(jnp.float32) * x.astype(jnp.float32), filt,
        window_strides=(stride, stride),
        padding=[(pad, pad), (pad, pad)],
        dimension_numbers=("NCHW", "OIHW", "NCHW"),
        feature_group_count=c,
        precision=lax.Precision.HIGHEST)
    return jnp.sqrt(out + 1e-12).astype(x.dtype)


if __name__ == "__main__":
    key = jax.random.PRNGKey(0)
    x = jax.random.normal(key, (2, 4, 16, 16), dtype=jnp.float32)

    out = l2pooling(x)
    jax.block_until_ready(out)

    assert out.shape == (2, 4, 8, 8), out.shape
    ref = _reference(x)
    np.testing.assert_allclose(np.asarray(out), np.asarray(ref), rtol=1e-5, atol=1e-5)

    print("KERNEL_OK")
</pallas_src>

<mosaic_0001>
module attributes {stable_mosaic.version = 11 : i64} {
  func.func @_l2pool_kernel(%arg0: i32, %arg1: i32, %arg2: memref<1x16x16x4xf32, #tpu.memory_space<vmem>>, %arg3: memref<1x8x8x4xf32, #tpu.memory_space<vmem>>, %arg4: memref<8x16x4xf32, #tpu.memory_space<vmem>>, %arg5: memref<8x8x4xf32, #tpu.memory_space<vmem>>) attributes {dimension_semantics = [#tpu.dimension_semantics<parallel>, #tpu.dimension_semantics<parallel>], iteration_bounds = array<i64: 2, 1>, scalar_prefetch = 0 : i64, scratch_operands = 2 : i64, tpu.core_type = #tpu.core_type<tc>, window_params = [{transform_indices = @transform_0, window_bounds = array<i64: 1, 16, 16, 4>}, {transform_indices = @transform_1, window_bounds = array<i64: 1, 8, 8, 4>}]} {
    %cst = arith.constant 0.000000e+00 : f32
    %0 = vector.broadcast %cst : f32 to vector<8x1x4xf32>
    %c0 = arith.constant 0 : index
    %c0_0 = arith.constant 0 : index
    %c0_1 = arith.constant 0 : index
    %1 = vector.load %arg5[%c0, %c0_0, %c0_1] : memref<8x8x4xf32, #tpu.memory_space<vmem>>, vector<8x1x4xf32>
    tpu.vector_store %arg5[%c0, %c0_0, %c0_1], %0 {strides = array<i32>} : memref<8x8x4xf32, #tpu.memory_space<vmem>>, vector<8x1x4xf32>,
    %c0_2 = arith.constant 0 : index
    %c0_3 = arith.constant 0 : index
    %c0_4 = arith.constant 0 : index
    %c0_5 = arith.constant 0 : index
    %2 = vector.load %arg2[%c0_2, %c0_3, %c0_4, %c0_5] : memref<1x16x16x4xf32, #tpu.memory_space<vmem>>, vector<1x16x16x4xf32>
    %3 = vector.shape_cast %2 : vector<1x16x16x4xf32> to vector<16x16x4xf32>
    %4 = vector.shape_cast %3 : vector<16x16x4xf32> to vector<8x2x16x4xf32>
    %5 = vector.extract_strided_slice %4 {offsets = [0, 0, 0, 0], sizes = [8, 1, 16, 4], strides = [1, 1, 1, 1]} : vector<8x2x16x4xf32> to vector<8x1x16x4xf32>
    %6 = vector.shape_cast %5 : vector<8x1x16x4xf32> to vector<8x16x4xf32>
    %7 = vector.extract_strided_slice %4 {offsets = [0, 1, 0, 0], sizes = [8, 1, 16, 4], strides = [1, 1, 1, 1]} : vector<8x2x16x4xf32> to vector<8x1x16x4xf32>
    %8 = vector.shape_cast %7 : vector<8x1x16x4xf32> to vector<8x16x4xf32>
    %9 = arith.mulf %8, %8 : vector<8x16x4xf32>
    %10 = arith.mulf %6, %6 : vector<8x16x4xf32>
    %cst_6 = arith.constant 5.000000e-01 : f32
    %11 = vector.broadcast %cst_6 : f32 to vector<8x16x4xf32>
    %12 = arith.mulf %11, %10 : vector<8x16x4xf32>
    %cst_7 = arith.constant 2.500000e-01 : f32
    %13 = vector.broadcast %cst_7 : f32 to vector<8x16x4xf32>
    %14 = arith.mulf %13, %9 : vector<8x16x4xf32>
    %15 = arith.addf %12, %14 : vector<8x16x4xf32>
    %c0_8 = arith.constant 0 : index
    %c0_9 = arith.constant 0 : index
    %c0_10 = arith.constant 0 : index
    %16 = vector.load %arg4[%c0_8, %c0_9, %c0_10] : memref<8x16x4xf32, #tpu.memory_space<vmem>>, vector<8x16x4xf32>
    tpu.vector_store %arg4[%c0_8, %c0_9, %c0_10], %15 {strides = array<i32>} : memref<8x16x4xf32, #tpu.memory_space<vmem>>, vector<8x16x4xf32>,
    %c1 = arith.constant 1 : index
    %c0_11 = arith.constant 0 : index
    %c0_12 = arith.constant 0 : index
    %17 = vector.load %arg4[%c1, %c0_11, %c0_12] : memref<8x16x4xf32, #tpu.memory_space<vmem>>, vector<7x16x4xf32>
    %18 = vector.extract_strided_slice %9 {offsets = [0, 0, 0], sizes = [7, 16, 4], strides = [1, 1, 1]} : vector<8x16x4xf32> to vector<7x16x4xf32>
    %cst_13 = arith.constant 2.500000e-01 : f32
    %19 = vector.broadcast %cst_13 : f32 to vector<7x16x4xf32>
    %20 = arith.mulf %19, %18 : vector<7x16x4xf32>
    %21 = arith.addf %17, %20 : vector<7x16x4xf32>
    %c1_14 = arith.constant 1 : index
    %c0_15 = arith.constant 0 : index
    %c0_16 = arith.constant 0 : index
    %22 = vector.load %arg4[%c1_14, %c0_15, %c0_16] : memref<8x16x4xf32, #tpu.memory_space<vmem>>, vector<7x16x4xf32>
    tpu.vector_store %arg4[%c1_14, %c0_15, %c0_16], %21 {strides = array<i32>} : memref<8x16x4xf32, #tpu.memory_space<vmem>>, vector<7x16x4xf32>,
    %c0_17 = arith.constant 0 : index
    %c0_18 = arith.constant 0 : index
    %c0_19 = arith.constant 0 : index
    %23 = tpu.strided_load %arg4[%c0_17, %c0_18, %c0_19] {strides = array<i32: 1, 2, 1>} : memref<8x16x4xf32, #tpu.memory_space<vmem>>, vector<8x8x4xf32>
    %c0_20 = arith.constant 0 : index
    %c1_21 = arith.constant 1 : index
    %c0_22 = arith.constant 0 : index
    %24 = tpu.strided_load %arg4[%c0_20, %c1_21, %c0_22] {strides = array<i32: 1, 2, 1>} : memref<8x16x4xf32, #tpu.memory_space<vmem>>, vector<8x8x4xf32>
    %25 = vector.extract_strided_slice %24 {offsets = [0, 0, 0], sizes = [8, 7, 4], strides = [1, 1, 1]} : vector<8x8x4xf32> to vector<8x7x4xf32>
    %c0_23 = arith.constant 0 : index
    %c1_24 = arith.constant 1 : index
    %c0_25 = arith.constant 0 : index
    %26 = vector.load %arg5[%c0_23, %c1_24, %c0_25] : memref<8x8x4xf32, #tpu.memory_space<vmem>>, vector<8x7x4xf32>
    tpu.vector_store %arg5[%c0_23, %c1_24, %c0_25], %25 {strides = array<i32>} : memref<8x8x4xf32, #tpu.memory_space<vmem>>, vector<8x7x4xf32>,
    %c0_26 = arith.constant 0 : index
    %c0_27 = arith.constant 0 : index
    %c0_28 = arith.constant 0 : index
    %27 = vector.load %arg5[%c0_26, %c0_27, %c0_28] : memref<8x8x4xf32, #tpu.memory_space<vmem>>, vector<8x8x4xf32>
    %cst_29 = arith.constant 5.000000e-01 : f32
    %28 = vector.broadcast %cst_29 : f32 to vector<8x8x4xf32>
    %29 = arith.mulf %28, %23 : vector<8x8x4xf32>
    %cst_30 = arith.constant 2.500000e-01 : f32
    %30 = vector.broadcast %cst_30 : f32 to vector<8x8x4xf32>
    %31 = arith.mulf %30, %24 : vector<8x8x4xf32>
    %32 = arith.addf %29, %31 : vector<8x8x4xf32>
    %cst_31 = arith.constant 2.500000e-01 : f32
    %33 = vector.broadcast %cst_31 : f32 to vector<8x8x4xf32>
    %34 = arith.mulf %33, %27 : vector<8x8x4xf32>
    %35 = arith.addf %32, %34 : vector<8x8x4xf32>
    %cst_32 = arith.constant 9.99999996E-13 : f32
    %36 = vector.broadcast %cst_32 : f32 to vector<8x8x4xf32>
    %37 = arith.addf %35, %36 : vector<8x8x4xf32>
    %38 = math.sqrt %37 : vector<8x8x4xf32>
    %c0_33 = arith.constant 0 : index
    %c0_34 = arith.constant 0 : index
    %c0_35 = arith.constant 0 : index
    %c0_36 = arith.constant 0 : index
    %39 = vector.load %arg3[%c0_33, %c0_34, %c0_35, %c0_36] : memref<1x8x8x4xf32, #tpu.memory_space<vmem>>, vector<1x8x8x4xf32>
    %40 = vector.shape_cast %39 : vector<1x8x8x4xf32> to vector<8x8x4xf32>
    %41 = vector.shape_cast %38 : vector<8x8x4xf32> to vector<1x8x8x4xf32>
    tpu.vector_store %arg3[%c0_33, %c0_34, %c0_35, %c0_36], %41 {strides = array<i32>} : memref<1x8x8x4xf32, #tpu.memory_space<vmem>>, vector<1x8x8x4xf32>,
    return
  }
  func.func @transform_0(%arg0: i32, %arg1: i32) -> (i32, i32, i32, i32) {
    %c0_i32 = arith.constant 0 : i32
    %c0_i32_0 = arith.constant 0 : i32
    %c0_i32_1 = arith.constant 0 : i32
    return %arg0, %c0_i32, %c0_i32_0, %arg1 : i32, i32, i32, i32
  }
  func.func @transform_1(%arg0: i32, %arg1: i32) -> (i32, i32, i32, i32) {
    %c0_i32 = arith.constant 0 : i32
    %c0_i32_0 = arith.constant 0 : i32
    %c0_i32_1 = arith.constant 0 : i32
    return %arg0, %c0_i32, %c0_i32_0, %arg1 : i32, i32, i32, i32
  }
}

</mosaic_0001>

<llo_original>
// kernel: tpu_custom_call.1
$region0: #{tpu_custom_call.1}
  #allocation0 [shape = 'u32[]', space=smem, size = 0x4, offset = 0x4, fixed_abs, tag = 'smem constant byte address 0x4 - core index']
  #allocation1 [shape = 'u32[144,128]{1,0:T(1,128)}', space=vmem, size = 0x12000, scoped, tag = 'internal scratch']
  #allocation2 [shape = 'f32[8,16,4]{2,1,0:T(8,128)}', space=vmem, size = 0x10000, scoped, tag = 'scratch operand']
  #allocation3 [shape = 'f32[8,8,4]{2,1,0:T(8,128)}', space=vmem, size = 0x8000, scoped, tag = 'scratch operand']
  %s0 = inlined_call_operand.vmem [shape: f32[2,16,16,4], index: 0, kind: input, shape index: {}]
  %s1 = inlined_call_operand.vmem [shape: f32[2,8,8,4], index: 1, kind: output, shape index: {}]
  %s2 = sld [smem:[#allocation0]]
  $region37: #{tpu_custom_call.1} parent=0
    _
  %s4 = ssub.s32 1, %s2
  %s5 = scalar_select 0, %s4, %s2
  loop: start=0, step=1, limit=4
  $region2: #{tpu_custom_call.1} parent=0 // loop_pre_header
    _
  $region3: #{tpu_custom_call.1} parent=0 // loop_header
    %s7 = sphi 0, %s11
    %p8 = scmp.ge.s32.totalorder %s7, 4
    %s14 = sphi 0, %s26
    %s15 = sphi 0, %s22
    %s16 = sphi 0, %s14
    %s17 = sphi 0, %s15
    %s18 = sphi 0, %s16
    %s19 = sphi 0, %s17
    %s31 = sphi 0, %s33
    %s34 = sphi 0, %s31
    %s35 = sphi 0, %s34
    %s51 = sphi 0, %s35
    %s59 = sphi 0, %s61
    %s62 = sphi 0, %s59
    %s63 = sphi 0, %s62
    %s79 = sphi 0, %s63
  $region4: #{tpu_custom_call.1} parent=0 // loop_header_branch
    %10 = sbr.rel (%p8) target = $region8
  $region5: #{tpu_custom_call.1} parent=0 // loop_body
    %s12 = ssub.s32 %s7, 1
    %s13 = ssub.s32 %s7, 2
    %s20 = sadd.s32 1, %s15
    %p21 = scmp.ge.s32.totalorder %s20, 1
    %s22 = scalar_select %p21, 0, %s20
    %s23 = sadd.s32 1, %s14
    %s24 = scalar_select %p21, %s23, %s14
    %p25 = scmp.ge.s32.totalorder %s24, 2
    %s26 = scalar_select %p25, 0, %s24
    %s27 = ssub.s32 %s14, %s26
    %s28 = ssub.s32 %s15, %s22
    %s29 = sor.u32 %s27, %s28
    %p30 = scmp.eq.s32.totalorder %s29, 0
    %s32 = sadd.s32 %s31, 1
    %s33 = scalar_select %p30, %s31, %s32
    %p36 = pneg %p30
    %p37 = scmp.eq.s32.totalorder %s7, 1
    %p38 = por %p36, %p37
    %p39 = scmp.ne.s32.totalorder %s31, %s34
    %p40 = scmp.eq.s32.totalorder %s7, 0
    %p41 = por %p39, %p40
    %p42 = scmp.ne.s32.totalorder %s31, %s34
    %p43 = scmp.eq.s32.totalorder %s12, 1
    %p44 = por %p42, %p43
    %p45 = scmp.ne.s32.totalorder %s34, %s35
    %p46 = scmp.eq.s32.totalorder %s12, 0
    %p47 = por %p45, %p46
    %p48 = scmp.ne.s32.totalorder %s34, %s35
    %p49 = scmp.eq.s32.totalorder %s13, 1
    %p50 = por %p48, %p49
    %p52 = scmp.ne.s32.totalorder %s35, %s51
    %p53 = scmp.eq.s32.totalorder %s13, 0
    %p54 = por %p52, %p53
    %s55 = ssub.s32 %s14, %s26
    %s56 = ssub.s32 %s15, %s22
    %s57 = sor.u32 %s55, %s56
    %p58 = scmp.eq.s32.totalorder %s57, 0
    %s60 = sadd.s32 %s59, 1
    %s61 = scalar_select %p58, %s59, %s60
    %p64 = pneg %p58
    %p65 = scmp.eq.s32.totalorder %s7, 1
    %p66 = por %p64, %p65
    %p67 = scmp.ne.s32.totalorder %s59, %s62
    %p68 = scmp.eq.s32.totalorder %s7, 0
    %p69 = por %p67, %p68
    %p70 = scmp.ne.s32.totalorder %s59, %s62
    %p71 = scmp.eq.s32.totalorder %s12, 1
    %p72 = por %p70, %p71
    %p73 = scmp.ne.s32.totalorder %s62, %s63
    %p74 = scmp.eq.s32.totalorder %s12, 0
    %p75 = por %p73, %p74
    %p76 = scmp.ne.s32.totalorder %s62, %s63
    %p77 = scmp.eq.s32.totalorder %s13, 1
    %p78 = por %p76, %p77
    %p80 = scmp.ne.s32.totalorder %s63, %s79
    %p81 = scmp.eq.s32.totalorder %s13, 0
    %p82 = por %p80, %p81
    %p83 = scmp.le.s32.totalorder 1, %s7
    %p84 = scmp.lt.s32.totalorder %s7, 3
    %p85 = pnand %p83, %p84
    %p86 = pneg %p85
    // Predicated region
    $region9: #{tpu_custom_call.1} parent=5 // pred_check
      _
    $region10: #{tpu_custom_call.1} parent=5 // pred_check_branch
      %88 = sbr.rel (%p85) target = $region12
    $region11: #{tpu_custom_call.1} parent=5 // pred_region
      %s89 = ssub.s32 %s7, 1
    $region12: #{tpu_custom_call.1} parent=5 // pred_fallthru
      _
    %p90 = scmp.lt.s32.totalorder %s7, 2
    // Predicated region
    $region13: #{tpu_custom_call.1} parent=5 // pred_check
      %p91 = pneg %p90
    $region14: #{tpu_custom_call.1} parent=5 // pred_check_branch
      %93 = sbr.rel (%p91) target = $region16
    $region15: #{tpu_custom_call.1} parent=5 // pred_region
      // Predicated region
      $region17: #{tpu_custom_call.1} parent=15 // pred_check
        %p94 = pneg %p41
      $region18: #{tpu_custom_call.1} parent=15 // pred_check_branch
        %96 = sbr.rel (%p94) target = $region20
      $region19: #{tpu_custom_call.1} parent=15 // pred_region
        %p97 = scmp.lt.s32.totalorder %s14, 1
        %s98 = scalar_select %p97, %s14, 1
        %p99 = scmp.lt.s32.totalorder %s15, 0
        %s100 = scalar_select %p99, %s15, 0
        %s101 = smul.addr %s98, 32
        %s102 = sadd.s32 %s100, %s101
        %s103 = smul.addr %s102, 8
        %s104 = scalar_lea.vmem %s0, %s103
      $region20: #{tpu_custom_call.1} parent=15 // pred_fallthru
        _
    $region16: #{tpu_custom_call.1} parent=5 // pred_fallthru
      _
    %p105 = scmp.le.s32.totalorder 1, %s7
    %p106 = scmp.lt.s32.totalorder %s7, 3
    %p107 = pnand %p105, %p106
    %p108 = pneg %p107
    // Predicated region
    $region21: #{tpu_custom_call.1} parent=5 // pred_check
      _
    $region22: #{tpu_custom_call.1} parent=5 // pred_check_branch
      %110 = sbr.rel (%p107) target = $region24
    $region23: #{tpu_custom_call.1} parent=5 // pred_region
      %s111 = ssub.s32 %s7, 1
      %p112 = scmp.lt.s32.totalorder %s16, 1
      %s113 = scalar_select %p112, %s16, 1
      %p114 = scmp.lt.s32.totalorder %s17, 0
      %s115 = scalar_select %p114, %s17, 0
      %s116 = smul.addr %s113, 32
      %s117 = sadd.s32 %s115, %s116
      %s118 = smul.addr %s117, 8
      %s119 = scalar_lea.vmem %s0, %s118
      %p120 = pneg %p47
      %p121 = pneg %p44
      %p122 = pneg %p75
      %p123 = pneg %p72
      %p124 = scmp.lt.s32.totalorder %s16, 1
      %s125 = scalar_select %p124, %s16, 1
      %p126 = scmp.lt.s32.totalorder %s17, 0
      %s127 = scalar_select %p126, %s17, 0
      %s128 = smul.addr %s125, 8
      %s129 = sadd.s32 %s127, %s128
      %s130 = smul.addr %s129, 8
      %s131 = scalar_lea.vmem %s1, %s130
      %p132 = scmp.lt.s32.totalorder %s16, 1
      %s133 = scalar_select %p132, %s16, 1
      %p134 = scmp.lt.s32.totalorder %s17, 0
      %s135 = scalar_select %p134, %s17, 0
      %s136 = smul.addr %s133, 32
      %s137 = sadd.s32 %s135, %s136
      %s138 = smul.addr %s137, 8
      %s139 = scalar_lea.vmem %s0, %s138
      %p140 = scmp.lt.s32.totalorder %s16, 1
      %s141 = scalar_select %p140, %s16, 1
      %p142 = scmp.lt.s32.totalorder %s17, 0
      %s143 = scalar_select %p142, %s17, 0
      %s144 = smul.addr %s141, 8
      %s145 = sadd.s32 %s143, %s144
      %s146 = smul.addr %s145, 8
      %s147 = scalar_lea.vmem %s1, %s146
      %vm148 = vcmask 24576
      %149 = vst.msk [vmem:[#allocation3] sm:$0x1] %vm148, 0.0
      %150 = vst.msk [vmem:[#allocation3 + $0x8] sm:$0x1] %vm148, 0.0
      %151 = vst.msk [vmem:[#allocation3 + $0x10] sm:$0x1] %vm148, 0.0
      %152 = vst.msk [vmem:[#allocation3 + $0x18] sm:$0x1] %vm148, 0.0
      %153 = vst.msk [vmem:[#allocation3 + $0x20] sm:$0x1] %vm148, 0.0
      %154 = vst.msk [vmem:[#allocation3 + $0x28] sm:$0x1] %vm148, 0.0
      %155 = vst.msk [vmem:[#allocation3 + $0x30] sm:$0x1] %vm148, 0.0
      %156 = vst.msk [vmem:[#allocation3 + $0x38] sm:$0x1] %vm148, 0.0
      %v157 = vld [vmem:[%s139] sm:$0xff]
      %v158 = vld [vmem:[%s139 + $0x8] sm:$0xff]
      %v159 = vld [vmem:[%s139 + $0x10] sm:$0xff]
      %v160 = vld [vmem:[%s139 + $0x18] sm:$0xff]
      %v161 = vld [vmem:[%s139 + $0x20] sm:$0xff]
      %v162 = vld [vmem:[%s139 + $0x28] sm:$0xff]
      %v163 = vld [vmem:[%s139 + $0x30] sm:$0xff]
      %v164 = vld [vmem:[%s139 + $0x38] sm:$0xff]
      %v165 = vld [vmem:[%s139 + $0x40] sm:$0xff]
      %v166 = vld [vmem:[%s139 + $0x48] sm:$0xff]
      %v167 = vld [vmem:[%s139 + $0x50] sm:$0xff]
      %v168 = vld [vmem:[%s139 + $0x58] sm:$0xff]
      %v169 = vld [vmem:[%s139 + $0x60] sm:$0xff]
      %v170 = vld [vmem:[%s139 + $0x68] sm:$0xff]
      %v171 = vld [vmem:[%s139 + $0x70] sm:$0xff]
      %v172 = vld [vmem:[%s139 + $0x78] sm:$0xff]
      %v173 = vld [vmem:[%s139 + $0x80] sm:$0xff]
      %v174 = vld [vmem:[%s139 + $0x88] sm:$0xff]
      %v175 = vld [vmem:[%s139 + $0x90] sm:$0xff]
      %v176 = vld [vmem:[%s139 + $0x98] sm:$0xff]
      %v177 = vld [vmem:[%s139 + $0xa0] sm:$0xff]
      %v178 = vld [vmem:[%s139 + $0xa8] sm:$0xff]
      %v179 = vld [vmem:[%s139 + $0xb0] sm:$0xff]
      %v180 = vld [vmem:[%s139 + $0xb8] sm:$0xff]
      %v181 = vld [vmem:[%s139 + $0xc0] sm:$0xff]
      %v182 = vld [vmem:[%s139 + $0xc8] sm:$0xff]
      %v183 = vld [vmem:[%s139 + $0xd0] sm:$0xff]
      %v184 = vld [vmem:[%s139 + $0xd8] sm:$0xff]
      %v185 = vld [vmem:[%s139 + $0xe0] sm:$0xff]
      %v186 = vld [vmem:[%s139 + $0xe8] sm:$0xff]
      %v187 = vld [vmem:[%s139 + $0xf0] sm:$0xff]
      %v188 = vld [vmem:[%s139 + $0xf8] sm:$0xff]
      %v189 = vmul.f32 %v159, %v159
      %v190 = vmul.f32 %v160, %v160
      %v191 = vmul.f32 %v163, %v163
      %v192 = vmul.f32 %v164, %v164
      %v193 = vmul.f32 %v167, %v167
      %v194 = vmul.f32 %v168, %v168
      %v195 = vmul.f32 %v171, %v171
      %v196 = vmul.f32 %v172, %v172
      %v197 = vmul.f32 %v175, %v175
      %v198 = vmul.f32 %v176, %v176
      %v199 = vmul.f32 %v179, %v179
      %v200 = vmul.f32 %v180, %v180
      %v201 = vmul.f32 %v183, %v183
      %v202 = vmul.f32 %v184, %v184
      %v203 = vmul.f32 %v187, %v187
      %v204 = vmul.f32 %v188, %v188
      %v205 = vmul.f32 %v157, %v157
      %v206 = vmul.f32 %v158, %v158
      %v207 = vmul.f32 %v161, %v161
      %v208 = vmul.f32 %v162, %v162
      %v209 = vmul.f32 %v165, %v165
      %v210 = vmul.f32 %v166, %v166
      %v211 = vmul.f32 %v169, %v169
      %v212 = vmul.f32 %v170, %v170
      %v213 = vmul.f32 %v173, %v173
      %v214 = vmul.f32 %v174, %v174
      %v215 = vmul.f32 %v177, %v177
      %v216 = vmul.f32 %v178, %v178
      %v217 = vmul.f32 %v181, %v181
      %v218 = vmul.f32 %v182, %v182
      %v219 = vmul.f32 %v185, %v185
      %v220 = vmul.f32 %v186, %v186
      %v221 = vmul.f32 %v205, 0.5
      %v222 = vmul.f32 %v206, 0.5
      %v223 = vmul.f32 %v207, 0.5
      %v224 = vmul.f32 %v208, 0.5
      %v225 = vmul.f32 %v209, 0.5
      %v226 = vmul.f32 %v210, 0.5
      %v227 = vmul.f32 %v211, 0.5
      %v228 = vmul.f32 %v212, 0.5
      %v229 = vmul.f32 %v213, 0.5
      %v230 = vmul.f32 %v214, 0.5
      %v231 = vmul.f32 %v215, 0.5
      %v232 = vmul.f32 %v216, 0.5
      %v233 = vmul.f32 %v217, 0.5
      %v234 = vmul.f32 %v218, 0.5
      %v235 = vmul.f32 %v219, 0.5
      %v236 = vmul.f32 %v220, 0.5
      %v237 = vmul.f32 %v189, 0.25
      %v238 = vmul.f32 %v190, 0.25
      %v239 = vmul.f32 %v191, 0.25
      %v240 = vmul.f32 %v192, 0.25
      %v241 = vmul.f32 %v193, 0.25
      %v242 = vmul.f32 %v194, 0.25
      %v243 = vmul.f32 %v195, 0.25
      %v244 = vmul.f32 %v196, 0.25
      %v245 = vmul.f32 %v197, 0.25
      %v246 = vmul.f32 %v198, 0.25
      %v247 = vmul.f32 %v199, 0.25
      %v248 = vmul.f32 %v200, 0.25
      %v249 = vmul.f32 %v201, 0.25
      %v250 = vmul.f32 %v202, 0.25
      %v251 = vmul.f32 %v203, 0.25
      %v252 = vmul.f32 %v204, 0.25
      %v253 = vadd.f32 %v221, %v237
      %v254 = vadd.f32 %v222, %v238
      %v255 = vadd.f32 %v223, %v239
      %v256 = vadd.f32 %v224, %v240
      %v257 = vadd.f32 %v225, %v241
      %v258 = vadd.f32 %v226, %v242
      %v259 = vadd.f32 %v227, %v243
      %v260 = vadd.f32 %v228, %v244
      %v261 = vadd.f32 %v229, %v245
      %v262 = vadd.f32 %v230, %v246
      %v263 = vadd.f32 %v231, %v247
      %v264 = vadd.f32 %v232, %v248
      %v265 = vadd.f32 %v233, %v249
      %v266 = vadd.f32 %v234, %v250
      %v267 = vadd.f32 %v235, %v251
      %v268 = vadd.f32 %v236, %v252
      %vm269 = vcmask 31744
      %270 = vst.msk [vmem:[#allocation2] sm:$0xff] %vm269, %v253
      %271 = vst.msk [vmem:[#allocation2 + $0x8] sm:$0xff] %vm269, %v254
      %272 = vst.msk [vmem:[#allocation2 + $0x10] sm:$0xff] %vm269, %v255
      %273 = vst.msk [vmem:[#allocation2 + $0x18] sm:$0xff] %vm269, %v256
      %274 = vst.msk [vmem:[#allocation2 + $0x20] sm:$0xff] %vm269, %v257
      %275 = vst.msk [vmem:[#allocation2 + $0x28] sm:$0xff] %vm269, %v258
      %276 = vst.msk [vmem:[#allocation2 + $0x30] sm:$0xff] %vm269, %v259
      %277 = vst.msk [vmem:[#allocation2 + $0x38] sm:$0xff] %vm269, %v260
      %278 = vst.msk [vmem:[#allocation2 + $0x40] sm:$0xff] %vm269, %v261
      %279 = vst.msk [vmem:[#allocation2 + $0x48] sm:$0xff] %vm269, %v262
      %280 = vst.msk [vmem:[#allocation2 + $0x50] sm:$0xff] %vm269, %v263
      %281 = vst.msk [vmem:[#allocation2 + $0x58] sm:$0xff] %vm269, %v264
      %282 = vst.msk [vmem:[#allocation2 + $0x60] sm:$0xff] %vm269, %v265
      %283 = vst.msk [vmem:[#allocation2 + $0x68] sm:$0xff] %vm269, %v266
      %284 = vst.msk [vmem:[#allocation2 + $0x70] sm:$0xff] %vm269, %v267
      %285 = vst.msk [vmem:[#allocation2 + $0x78] sm:$0xff] %vm269, %v268
      %s286 = scalar_lea.vmem [#allocation2], 16
      %v287 = vld [vmem:[%s286] sm:$0xff]
      %v288 = vld [vmem:[%s286 + $0x8] sm:$0xff]
      %v289 = vld [vmem:[%s286 + $0x10] sm:$0xff]
      %v290 = vld [vmem:[%s286 + $0x18] sm:$0xff]
      %v291 = vld [vmem:[%s286 + $0x20] sm:$0xff]
      %v292 = vld [vmem:[%s286 + $0x28] sm:$0xff]
      %v293 = vld [vmem:[%s286 + $0x30] sm:$0xff]
      %v294 = vld [vmem:[%s286 + $0x38] sm:$0xff]
      %v295 = vld [vmem:[%s286 + $0x40] sm:$0xff]
      %v296 = vld [vmem:[%s286 + $0x48] sm:$0xff]
      %v297 = vld [vmem:[%s286 + $0x50] sm:$0xff]
      %v298 = vld [vmem:[%s286 + $0x58] sm:$0xff]
      %v299 = vld [vmem:[%s286 + $0x60] sm:$0xff]
      %v300 = vld [vmem:[%s286 + $0x68] sm:$0xff]
      %v301 = vadd.f32 %v287, %v237
      %v302 = vadd.f32 %v288, %v238
      %v303 = vadd.f32 %v289, %v239
      %v304 = vadd.f32 %v290, %v240
      %v305 = vadd.f32 %v291, %v241
      %v306 = vadd.f32 %v292, %v242
      %v307 = vadd.f32 %v293, %v243
      %v308 = vadd.f32 %v294, %v244
      %v309 = vadd.f32 %v295, %v245
      %v310 = vadd.f32 %v296, %v246
      %v311 = vadd.f32 %v297, %v247
      %v312 = vadd.f32 %v298, %v248
      %v313 = vadd.f32 %v299, %v249
      %v314 = vadd.f32 %v300, %v250
      %315 = vst.msk [vmem:[%s286] sm:$0xff] %vm269, %v301
      %316 = vst.msk [vmem:[%s286 + $0x8] sm:$0xff] %vm269, %v302
      %317 = vst.msk [vmem:[%s286 + $0x10] sm:$0xff] %vm269, %v303
      %318 = vst.msk [vmem:[%s286 + $0x18] sm:$0xff] %vm269, %v304
      %319 = vst.msk [vmem:[%s286 + $0x20] sm:$0xff] %vm269, %v305
      %320 = vst.msk [vmem:[%s286 + $0x28] sm:$0xff] %vm269, %v306
      %321 = vst.msk [vmem:[%s286 + $0x30] sm:$0xff] %vm269, %v307
      %322 = vst.msk [vmem:[%s286 + $0x38] sm:$0xff] %vm269, %v308
      %323 = vst.msk [vmem:[%s286 + $0x40] sm:$0xff] %vm269, %v309
      %324 = vst.msk [vmem:[%s286 + $0x48] sm:$0xff] %vm269, %v310
      %325 = vst.msk [vmem:[%s286 + $0x50] sm:$0xff] %vm269, %v311
      %326 = vst.msk [vmem:[%s286 + $0x58] sm:$0xff] %vm269, %v312
      %327 = vst.msk [vmem:[%s286 + $0x60] sm:$0xff] %vm269, %v313
      %328 = vst.msk [vmem:[%s286 + $0x68] sm:$0xff] %vm269, %v314
      %v329 = vld [vmem:[#allocation2] ss:$2 sm:$0xff]
      %s330 = scalar_lea.vmem [#allocation2], 16
      %v331 = vld [vmem:[%s330] ss:$2 sm:$0xff]
      %s332 = scalar_lea.vmem [#allocation2], 32
      %v333 = vld [vmem:[%s332] ss:$2 sm:$0xff]
      %s334 = scalar_lea.vmem [#allocation2], 48
      %v335 = vld [vmem:[%s334] ss:$2 sm:$0xff]
      %s336 = scalar_lea.vmem [#allocation2], 64
      %v337 = vld [vmem:[%s336] ss:$2 sm:$0xff]
      %s338 = scalar_lea.vmem [#allocation2], 80
      %v339 = vld [vmem:[%s338] ss:$2 sm:$0xff]
      %s340 = scalar_lea.vmem [#allocation2], 96
      %v341 = vld [vmem:[%s340] ss:$2 sm:$0xff]
      %s342 = scalar_lea.vmem [#allocation2], 112
      %v343 = vld [vmem:[%s342] ss:$2 sm:$0xff]
      %s344 = scalar_lea.vmem [#allocation2], 1
      %v345 = vld [vmem:[%s344] ss:$2 sm:$0xff]
      %s346 = scalar_lea.vmem [#allocation2], 17
      %v347 = vld [vmem:[%s346] ss:$2 sm:$0xff]
      %s348 = scalar_lea.vmem [#allocation2], 33
      %v349 = vld [vmem:[%s348] ss:$2 sm:$0xff]
      %s350 = scalar_lea.vmem [#allocation2], 49
      %v351 = vld [vmem:[%s350] ss:$2 sm:$0xff]
      %s352 = scalar_lea.vmem [#allocation2], 65
      %v353 = vld [vmem:[%s352] ss:$2 sm:$0xff]
      %s354 = scalar_lea.vmem [#allocation2], 81
      %v355 = vld [vmem:[%s354] ss:$2 sm:$0xff]
      %s356 = scalar_lea.vmem [#allocation2], 97
      %v357 = vld [vmem:[%s356] ss:$2 sm:$0xff]
      %s358 = scalar_lea.vmem [#allocation2], 113
      %v359 = vld [vmem:[%s358] ss:$2 sm:$0xff]
      %vm360 = vcmask 30720
      %361 = vst.msk [vmem:[#allocation3 + $0x1] sm:$0x7f] %vm360, %v345
      %362 = vst.msk [vmem:[#allocation3 + $0x9] sm:$0x7f] %vm360, %v347
      %363 = vst.msk [vmem:[#allocation3 + $0x11] sm:$0x7f] %vm360, %v349
      %364 = vst.msk [vmem:[#allocation3 + $0x19] sm:$0x7f] %vm360, %v351
      %365 = vst.msk [vmem:[#allocation3 + $0x21] sm:$0x7f] %vm360, %v353
      %366 = vst.msk [vmem:[#allocation3 + $0x29] sm:$0x7f] %vm360, %v355
      %367 = vst.msk [vmem:[#allocation3 + $0x31] sm:$0x7f] %vm360, %v357
      %368 = vst.msk [vmem:[#allocation3 + $0x39] sm:$0x7f] %vm360, %v359
      %v369 = vld [vmem:[#allocation3] sm:$0xff]
      %v370 = vld [vmem:[#allocation3 + $0x8] sm:$0xff]
      %v371 = vld [vmem:[#allocation3 + $0x10] sm:$0xff]
      %v372 = vld [vmem:[#allocation3 + $0x18] sm:$0xff]
      %v373 = vld [vmem:[#allocation3 + $0x20] sm:$0xff]
      %v374 = vld [vmem:[#allocation3 + $0x28] sm:$0xff]
      %v375 = vld [vmem:[#allocation3 + $0x30] sm:$0xff]
      %v376 = vld [vmem:[#allocation3 + $0x38] sm:$0xff]
      %v377 = vmul.f32 %v329, 0.5
      %v378 = vmul.f32 %v331, 0.5
      %v379 = vmul.f32 %v333, 0.5
      %v380 = vmul.f32 %v335, 0.5
      %v381 = vmul.f32 %v337, 0.5
      %v382 = vmul.f32 %v339, 0.5
      %v383 = vmul.f32 %v341, 0.5
      %v384 = vmul.f32 %v343, 0.5
      %v385 = vmul.f32 %v345, 0.25
      %v386 = vmul.f32 %v347, 0.25
      %v387 = vmul.f32 %v349, 0.25
      %v388 = vmul.f32 %v351, 0.25
      %v389 = vmul.f32 %v353, 0.25
      %v390 = vmul.f32 %v355, 0.25
      %v391 = vmul.f32 %v357, 0.25
      %v392 = vmul.f32 %v359, 0.25
      %v393 = vadd.f32 %v377, %v385
      %v394 = vadd.f32 %v378, %v386
      %v395 = vadd.f32 %v379, %v387
      %v396 = vadd.f32 %v380, %v388
      %v397 = vadd.f32 %v381, %v389
      %v398 = vadd.f32 %v382, %v390
      %v399 = vadd.f32 %v383, %v391
      %v400 = vadd.f32 %v384, %v392
      %v401 = vmul.f32 %v369, 0.25
      %v402 = vmul.f32 %v370, 0.25
      %v403 = vmul.f32 %v371, 0.25
      %v404 = vmul.f32 %v372, 0.25
      %v405 = vmul.f32 %v373, 0.25
      %v406 = vmul.f32 %v374, 0.25
      %v407 = vmul.f32 %v375, 0.25
      %v408 = vmul.f32 %v376, 0.25
      %v409 = vadd.f32 %v393, %v401
      %v410 = vadd.f32 %v394, %v402
      %v411 = vadd.f32 %v395, %v403
      %v412 = vadd.f32 %v396, %v404
      %v413 = vadd.f32 %v397, %v405
      %v414 = vadd.f32 %v398, %v406
      %v415 = vadd.f32 %v399, %v407
      %v416 = vadd.f32 %v400, %v408
      %v417 = vadd.f32 %v409, 1e-12
      %v418 = vadd.f32 %v410, 1e-12
      %v419 = vadd.f32 %v411, 1e-12
      %v420 = vadd.f32 %v412, 1e-12
      %v421 = vadd.f32 %v413, 1e-12
      %v422 = vadd.f32 %v414, 1e-12
      %v423 = vadd.f32 %v415, 1e-12
      %v424 = vadd.f32 %v416, 1e-12
      %v425 = vrsqrt.pop %v417
      %v426 = vmul.f32 %v417, %v425
      %vm427 = vcmp.eq.f32.partialorder %v417, inf
      %v428 = vsel %vm427, %v417, %v426
      %vm429 = vcmp.eq.f32.partialorder %v417, 0.0
      %v430 = vand.u32 %v417, 2147483648
      %v431 = vsel %vm429, %v430, %v428
      %v432 = vrsqrt.pop %v418
      %v433 = vmul.f32 %v418, %v432
      %vm434 = vcmp.eq.f32.partialorder %v418, inf
      %v435 = vsel %vm434, %v418, %v433
      %vm436 = vcmp.eq.f32.partialorder %v418, 0.0
      %v437 = vand.u32 %v418, 2147483648
      %v438 = vsel %vm436, %v437, %v435
      %v439 = vrsqrt.pop %v419
      %v440 = vmul.f32 %v419, %v439
      %vm441 = vcmp.eq.f32.partialorder %v419, inf
      %v442 = vsel %vm441, %v419, %v440
      %vm443 = vcmp.eq.f32.partialorder %v419, 0.0
      %v444 = vand.u32 %v419, 2147483648
      %v445 = vsel %vm443, %v444, %v442
      %v446 = vrsqrt.pop %v420
      %v447 = vmul.f32 %v420, %v446
      %vm448 = vcmp.eq.f32.partialorder %v420, inf
      %v449 = vsel %vm448, %v420, %v447
      %vm450 = vcmp.eq.f32.partialorder %v420, 0.0
      %v451 = vand.u32 %v420, 2147483648
      %v452 = vsel %vm450, %v451, %v449
      %v453 = vrsqrt.pop %v421
      %v454 = vmul.f32 %v421, %v453
      %vm455 = vcmp.eq.f32.partialorder %v421, inf
      %v456 = vsel %vm455, %v421, %v454
      %vm457 = vcmp.eq.f32.partialorder %v421, 0.0
      %v458 = vand.u32 %v421, 2147483648
      %v459 = vsel %vm457, %v458, %v456
      %v460 = vrsqrt.pop %v422
      %v461 = vmul.f32 %v422, %v460
      %vm462 = vcmp.eq.f32.partialorder %v422, inf
      %v463 = vsel %vm462, %v422, %v461
      %vm464 = vcmp.eq.f32.partialorder %v422, 0.0
      %v465 = vand.u32 %v422, 2147483648
      %v466 = vsel %vm464, %v465, %v463
      %v467 = vrsqrt.pop %v423
      %v468 = vmul.f32 %v423, %v467
      %vm469 = vcmp.eq.f32.partialorder %v423, inf
      %v470 = vsel %vm469, %v423, %v468
      %vm471 = vcmp.eq.f32.partialorder %v423, 0.0
      %v472 = vand.u32 %v423, 2147483648
      %v473 = vsel %vm471, %v472, %v470
      %v474 = vrsqrt.pop %v424
      %v475 = vmul.f32 %v424, %v474
      %vm476 = vcmp.eq.f32.partialorder %v424, inf
      %v477 = vsel %vm476, %v424, %v475
      %vm478 = vcmp.eq.f32.partialorder %v424, 0.0
      %v479 = vand.u32 %v424, 2147483648
      %v480 = vsel %vm478, %v479, %v477
      %481 = vst.msk [vmem:[%s147] sm:$0xff] %vm269, %v431
      %482 = vst.msk [vmem:[%s147 + $0x8] sm:$0xff] %vm269, %v438
      %483 = vst.msk [vmem:[%s147 + $0x10] sm:$0xff] %vm269, %v445
      %484 = vst.msk [vmem:[%s147 + $0x18] sm:$0xff] %vm269, %v452
      %485 = vst.msk [vmem:[%s147 + $0x20] sm:$0xff] %vm269, %v459
      %486 = vst.msk [vmem:[%s147 + $0x28] sm:$0xff] %vm269, %v466
      %487 = vst.msk [vmem:[%s147 + $0x30] sm:$0xff] %vm269, %v473
      %488 = vst.msk [vmem:[%s147 + $0x38] sm:$0xff] %vm269, %v480
      %p489 = scmp.lt.s32.totalorder %s16, 1
      %s490 = scalar_select %p489, %s16, 1
      %p491 = scmp.lt.s32.totalorder %s17, 0
      %s492 = scalar_select %p491, %s17, 0
      %s493 = smul.addr %s490, 8
      %s494 = sadd.s32 %s492, %s493
      %s495 = smul.addr %s494, 8
      %s496 = scalar_lea.vmem %s1, %s495
      // Predicated region
      $region25: #{tpu_custom_call.1} parent=23 // pred_check
        %p497 = pneg %p72
      $region26: #{tpu_custom_call.1} parent=23 // pred_check_branch
        %499 = sbr.rel (%p497) target = $region28
      $region27: #{tpu_custom_call.1} parent=23 // pred_region
        _
      $region28: #{tpu_custom_call.1} parent=23 // pred_fallthru
        _
    $region24: #{tpu_custom_call.1} parent=5 // pred_fallthru
      _
    %p500 = scmp.le.s32.totalorder 2, %s7
    // Predicated region
    $region29: #{tpu_custom_call.1} parent=5 // pred_check
      %p501 = pneg %p500
    $region30: #{tpu_custom_call.1} parent=5 // pred_check_branch
      %503 = sbr.rel (%p501) target = $region32
    $region31: #{tpu_custom_call.1} parent=5 // pred_region
      %s504 = ssub.s32 %s7, 2
      // Predicated region
      $region33: #{tpu_custom_call.1} parent=31 // pred_check
        %p505 = pneg %p78
      $region34: #{tpu_custom_call.1} parent=31 // pred_check_branch
        %507 = sbr.rel (%p505) target = $region36
      $region35: #{tpu_custom_call.1} parent=31 // pred_region
        %p508 = scmp.lt.s32.totalorder %s18, 1
        %s509 = scalar_select %p508, %s18, 1
        %p510 = scmp.lt.s32.totalorder %s19, 0
        %s511 = scalar_select %p510, %s19, 0
        %s512 = smul.addr %s509, 8
        %s513 = sadd.s32 %s511, %s512
        %s514 = smul.addr %s513, 8
        %s515 = scalar_lea.vmem %s1, %s514
      $region36: #{tpu_custom_call.1} parent=31 // pred_fallthru
        _
    $region32: #{tpu_custom_call.1} parent=5 // pred_fallthru
      _
  $region6: #{tpu_custom_call.1} parent=0 // loop_footer
    %s11 = sadd.s32 1, %s7
  $region7: #{tpu_custom_call.1} parent=0 // loop_footer_branch
    %6 = sbr.rel target = $region3
  $region8: #{tpu_custom_call.1} parent=0 // loop_exit
    _

</llo_original>
